<compile_context>
chip_gen: v5e
topology: v5e:2x2
jax: 0.10.0
libtpu: 0.0.40
codegen_flags: <defaults>
</compile_context>

<pallas_src>
import jax
import jax.numpy as jnp
from jax import lax
from jax.experimental import pallas as pl
from jax.experimental.pallas import tpu as pltpu

LF_N = 64             # params['LF_N']
BATCH = 8
JACOBI_ITERS = 20000  # only used by the pure-JAX validation reference


# ----------------------------------------------------------------------------
# Pallas kernel: closed-form effective coefficient K for one (N, bt) tile.
# Layout: grid points on sublanes (axis 0), batch on lanes (axis 1).
# ----------------------------------------------------------------------------
def lf_kernel(d_ref, k_ref):
    D = d_ref[...]                                   # (N, bt) f32
    N = D.shape[0]
    inv_d = 1.0 / D                                  # reciprocal (EUP + refine)
    total = jnp.sum(inv_d, axis=0, keepdims=True)    # (1, bt): sum over grid pts
    # endpoints count with half weight in the series-resistance sum
    corr = 0.5 * (inv_d[0:1, :] + inv_d[N - 1:N, :])
    resist = total - corr                            # R_total per batch column
    k_ref[...] = (N - 1.0) / resist                  # K_eff = (N-1)/R_total


def _pick_bt(B: int) -> int:
    """Batch-tile (lane) width.

    Small / lane-unaligned batches: one whole-array block (grid=(1,), no
    per-step overhead).  Large lane-aligned batches: lane-dense tiles
    (multiple of 128, capped at 2048) with >= 2 grid steps so v7x can shard
    the batch across both TensorCores via the "parallel" axis.
    """
    if B >= 256 and B % 128 == 0:
        bt = 128
        while bt * 2 <= 2048 and B % (bt * 2) == 0 and B // (bt * 2) >= 2:
            bt *= 2
        return bt
    return B


@jax.jit
def lf_layer_pallas(D):
    B, N = D.shape
    Dt = D.T                                         # (N, B): batch on lanes (wrapper-side layout plumbing)
    bt = _pick_bt(B)
    grid = (B // bt,)
    k = pl.pallas_call(
        lf_kernel,
        out_shape=jax.ShapeDtypeStruct((1, B), jnp.float32),
        grid=grid,
        in_specs=[pl.BlockSpec((N, bt), lambda i: (0, i))],
        out_specs=pl.BlockSpec((1, bt), lambda i: (0, i)),
        compiler_params=pltpu.CompilerParams(
            dimension_semantics=("parallel",)),      # real megacore split when grid >= 2 (v7x)
    )(Dt)
    return k[0, :]                                   # (B,), like torch.stack of scalars


# ----------------------------------------------------------------------------
# Pure-JAX references (validation only, not on the hot path).
# ----------------------------------------------------------------------------
@jax.jit
def lf_closed_ref(D):
    """Same closed-form math as the kernel, in plain JAX (tight check)."""
    B, N = D.shape
    inv_d = 1.0 / D
    resist = jnp.sum(inv_d, axis=-1) - 0.5 * (inv_d[:, 0] + inv_d[:, -1])
    return (N - 1.0) / resist


@jax.jit
def lf_jacobi_ref(D):
    """Converged Jacobi FD solve + mid-interface flux (original module semantics).

    (D U')' = 0, U(0)=1, U(1)=0, harmonic-mean interface coefficients; the
    division is hoisted out of the loop and the Dirichlet BCs are folded into
    the coefficients / constant vector.
    """
    B, N = D.shape
    Dn = jnp.concatenate([D[:, 1:], D[:, :1]], axis=1)          # D_{i+1}
    Wc = 2.0 * D * Dn / (D + Dn)                                # W_{i+1/2}
    col = lax.broadcasted_iota(jnp.int32, (B, N), 1)
    Wc = jnp.where(col <= N - 2, Wc, 0.0)
    Wa = jnp.concatenate([jnp.zeros_like(Wc[:, :1]), Wc[:, :-1]], axis=1)  # W_{i-1/2}
    interior = (col >= 1) & (col <= N - 2)
    denom = jnp.where(interior, Wa + Wc, 1.0)
    Wa_n = jnp.where(interior, Wa / denom, 0.0)                 # hoisted 1/denom
    Wc_n = jnp.where(interior, Wc / denom, 0.0)
    b = jnp.where(col == 0, 1.0, 0.0)                           # folded BCs
    u0 = 1.0 - col.astype(jnp.float32) / (N - 1)

    def shift_r(u):
        return jnp.concatenate([jnp.zeros_like(u[:, :1]), u[:, :-1]], axis=1)

    def shift_l(u):
        return jnp.concatenate([u[:, 1:], jnp.zeros_like(u[:, :1])], axis=1)

    def body(_, u):
        return Wa_n * shift_r(u) + Wc_n * shift_l(u) + b

    U = lax.fori_loop(0, JACOBI_ITERS, body, u0)
    mid = N // 2 - 1
    return Wc[:, mid] * (U[:, mid] - U[:, mid + 1]) * (N - 1)


if __name__ == "__main__":
    key = jax.random.PRNGKey(0)
    # Per-sample strictly positive coefficient field D, shape (batch, LF_N).
    # TODO(synk): FD1.solve / ut.give_K sources unavailable; physics re-derived
    # as steady 1-D diffusion with Dirichlet BCs and K = effective flux.
    D = jnp.exp(0.5 * jax.random.normal(key, (BATCH, LF_N), dtype=jnp.float32))

    k_pallas = jax.block_until_ready(lf_layer_pallas(D))
    k_closed = jax.block_until_ready(lf_closed_ref(D))
    k_jacobi = jax.block_until_ready(lf_jacobi_ref(D))

    assert k_pallas.shape == (BATCH,)
    assert jnp.all(jnp.isfinite(k_pallas))
    # Kernel lowering matches identical closed-form math (tight).
    assert jnp.allclose(k_pallas, k_closed, rtol=1e-5, atol=1e-6), (k_pallas, k_closed)
    # Closed form matches the converged iterative FD solve + mid-flux extraction
    # (tolerance limited only by Jacobi convergence of the reference).
    assert jnp.allclose(k_pallas, k_jacobi, rtol=1e-3, atol=1e-3), (k_pallas, k_jacobi)

    # Secondary check: lane-aligned larger batch exercises the lane-dense
    # (1, bt) output path and a multi-step "parallel" grid (bt=128, grid=(2,)).
    key2 = jax.random.PRNGKey(0)
    D_big = jnp.exp(0.5 * jax.random.normal(key2, (256, LF_N), dtype=jnp.float32))
    k_big = jax.block_until_ready(lf_layer_pallas(D_big))
    k_big_ref = jax.block_until_ready(lf_closed_ref(D_big))
    assert k_big.shape == (256,)
    assert jnp.allclose(k_big, k_big_ref, rtol=1e-5, atol=1e-6), (k_big, k_big_ref)

    print("KERNEL_OK")
</pallas_src>

<mosaic_0001>
module attributes {stable_mosaic.version = 11 : i64} {
  func.func @lf_kernel(%arg0: i32, %arg1: memref<64x8xf32, #tpu.memory_space<vmem>>, %arg2: memref<1x8xf32, #tpu.memory_space<vmem>>) attributes {dimension_semantics = [#tpu.dimension_semantics<parallel>], iteration_bounds = array<i64: 1>, scalar_prefetch = 0 : i64, scratch_operands = 0 : i64, tpu.core_type = #tpu.core_type<tc>, window_params = [{transform_indices = @transform_0, window_bounds = array<i64: 64, 8>}, {transform_indices = @transform_1, window_bounds = array<i64: 1, 8>}]} {
    %c0 = arith.constant 0 : index
    %c0_0 = arith.constant 0 : index
    %0 = vector.load %arg1[%c0, %c0_0] : memref<64x8xf32, #tpu.memory_space<vmem>>, vector<64x8xf32>
    %cst = arith.constant 1.000000e+00 : f32
    %1 = vector.broadcast %cst : f32 to vector<64x8xf32>
    %2 = arith.divf %1, %0 : vector<64x8xf32>
    %cst_1 = arith.constant dense<0.000000e+00> : vector<8xf32>
    %3 = vector.multi_reduction <add>, %2, %cst_1 [0] : vector<64x8xf32> to vector<8xf32>
    %4 = vector.shape_cast %3 : vector<8xf32> to vector<1x8xf32>
    %5 = vector.extract_strided_slice %2 {offsets = [0, 0], sizes = [1, 8], strides = [1, 1]} : vector<64x8xf32> to vector<1x8xf32>
    %6 = vector.extract_strided_slice %2 {offsets = [63, 0], sizes = [1, 8], strides = [1, 1]} : vector<64x8xf32> to vector<1x8xf32>
    %7 = arith.addf %5, %6 : vector<1x8xf32>
    %cst_2 = arith.constant 5.000000e-01 : f32
    %8 = vector.broadcast %cst_2 : f32 to vector<1x8xf32>
    %9 = arith.mulf %8, %7 : vector<1x8xf32>
    %10 = arith.subf %4, %9 : vector<1x8xf32>
    %cst_3 = arith.constant 6.300000e+01 : f32
    %11 = vector.broadcast %cst_3 : f32 to vector<1x8xf32>
    %12 = arith.divf %11, %10 : vector<1x8xf32>
    %c0_4 = arith.constant 0 : index
    %c0_5 = arith.constant 0 : index
    %13 = vector.load %arg2[%c0_4, %c0_5] : memref<1x8xf32, #tpu.memory_space<vmem>>, vector<1x8xf32>
    tpu.vector_store %arg2[%c0_4, %c0_5], %12 {strides = array<i32>} : memref<1x8xf32, #tpu.memory_space<vmem>>, vector<1x8xf32>,
    return
  }
  func.func @transform_0(%arg0: i32) -> (i32, i32) {
    %c0_i32 = arith.constant 0 : i32
    %c0_i32_0 = arith.constant 0 : i32
    return %c0_i32, %arg0 : i32, i32
  }
  func.func @transform_1(%arg0: i32) -> (i32, i32) {
    %c0_i32 = arith.constant 0 : i32
    %c0_i32_0 = arith.constant 0 : i32
    return %c0_i32, %arg0 : i32, i32
  }
}

</mosaic_0001>

<llo_original>
// kernel: lf_layer_pallas.1
$region0: #{lf_layer_pallas.1}
  #allocation0 [shape = 'u32[]', space=smem, size = 0x4, offset = 0x4, fixed_abs, tag = 'smem constant byte address 0x4 - core index']
  #allocation1 [shape = 'u32[72,128]{1,0:T(1,128)}', space=vmem, size = 0x9000, scoped, tag = 'internal scratch']
  %s0 = inlined_call_operand.vmem [shape: f32[64,8], index: 0, kind: input, shape index: {}]
  %s1 = inlined_call_operand.hbm [shape: f32[1,8], index: 1, kind: output, shape index: {}]
  %s2 = sld [smem:[#allocation0]]
  $region14: #{lf_layer_pallas.1} parent=0
    _
  %s4 = ssub.s32 1, %s2
  %s5 = scalar_select 0, %s4, %s2
  $region1: #{lf_layer_pallas.1} parent=0
    #allocation2 [shape = 'u8[512]{0}', space=vmem, size = 0x400, scoped, tag = 'output window, operand 0, single buffered']
    #allocation3 [shape = 's32[1]{0}', space=sflag, size = 0x4, scoped, tag = 'scoped memory for lf_layer_pallas.1']
    %6 = vsyncpa [#allocation3], 0
    // Predicated region
    $region2: #{lf_layer_pallas.1} parent=1 // pred_check
      _
    $region3: #{lf_layer_pallas.1} parent=1 // pred_check_branch
      %8 = sbr.rel (0) target = $region5
    $region4: #{lf_layer_pallas.1} parent=1 // pred_region
      _
    $region5: #{lf_layer_pallas.1} parent=1 // pred_fallthru
      _
    %v9 = vld [vmem:[%s0] sm:$0xff]
    %v10 = vld [vmem:[%s0 + $0x8] sm:$0xff]
    %v11 = vld [vmem:[%s0 + $0x10] sm:$0xff]
    %v12 = vld [vmem:[%s0 + $0x18] sm:$0xff]
    %v13 = vld [vmem:[%s0 + $0x20] sm:$0xff]
    %v14 = vld [vmem:[%s0 + $0x28] sm:$0xff]
    %v15 = vld [vmem:[%s0 + $0x30] sm:$0xff]
    %v16 = vld [vmem:[%s0 + $0x38] sm:$0xff]
    %v17 = vrcp.pop %v9
    %v18 = vmul.f32 %v9, %v17
    %v19 = vsub.f32 1.0, %v18
    %v20 = vmul.f32 %v17, %v19
    %v21 = vadd.f32 %v17, %v20
    %vm22 = vweird.f32 %v9
    %vm23 = vweird.f32 %v17
    %vm24 = vmor %vm22, %vm23
    %v25 = vsel %vm24, %v17, %v21
    %v26 = vand.u32 2147483647, %v9
    %vm27 = vcmp.eq.f32.partialorder %v26, 8.507059e+37
    %v28 = vand.u32 %v9, 2147483648
    %v29 = vor.u32 1.1754944e-38, %v28
    %v30 = vsel %vm27, %v29, %v25
    %v31 = vmul.f32 1.0, %v30
    %v32 = vrcp.pop %v10
    %v33 = vmul.f32 %v10, %v32
    %v34 = vsub.f32 1.0, %v33
    %v35 = vmul.f32 %v32, %v34
    %v36 = vadd.f32 %v32, %v35
    %vm37 = vweird.f32 %v10
    %vm38 = vweird.f32 %v32
    %vm39 = vmor %vm37, %vm38
    %v40 = vsel %vm39, %v32, %v36
    %v41 = vand.u32 2147483647, %v10
    %vm42 = vcmp.eq.f32.partialorder %v41, 8.507059e+37
    %v43 = vand.u32 %v10, 2147483648
    %v44 = vor.u32 1.1754944e-38, %v43
    %v45 = vsel %vm42, %v44, %v40
    %v46 = vmul.f32 1.0, %v45
    %v47 = vrcp.pop %v11
    %v48 = vmul.f32 %v11, %v47
    %v49 = vsub.f32 1.0, %v48
    %v50 = vmul.f32 %v47, %v49
    %v51 = vadd.f32 %v47, %v50
    %vm52 = vweird.f32 %v11
    %vm53 = vweird.f32 %v47
    %vm54 = vmor %vm52, %vm53
    %v55 = vsel %vm54, %v47, %v51
    %v56 = vand.u32 2147483647, %v11
    %vm57 = vcmp.eq.f32.partialorder %v56, 8.507059e+37
    %v58 = vand.u32 %v11, 2147483648
    %v59 = vor.u32 1.1754944e-38, %v58
    %v60 = vsel %vm57, %v59, %v55
    %v61 = vmul.f32 1.0, %v60
    %v62 = vrcp.pop %v12
    %v63 = vmul.f32 %v12, %v62
    %v64 = vsub.f32 1.0, %v63
    %v65 = vmul.f32 %v62, %v64
    %v66 = vadd.f32 %v62, %v65
    %vm67 = vweird.f32 %v12
    %vm68 = vweird.f32 %v62
    %vm69 = vmor %vm67, %vm68
    %v70 = vsel %vm69, %v62, %v66
    %v71 = vand.u32 2147483647, %v12
    %vm72 = vcmp.eq.f32.partialorder %v71, 8.507059e+37
    %v73 = vand.u32 %v12, 2147483648
    %v74 = vor.u32 1.1754944e-38, %v73
    %v75 = vsel %vm72, %v74, %v70
    %v76 = vmul.f32 1.0, %v75
    %v77 = vrcp.pop %v13
    %v78 = vmul.f32 %v13, %v77
    %v79 = vsub.f32 1.0, %v78
    %v80 = vmul.f32 %v77, %v79
    %v81 = vadd.f32 %v77, %v80
    %vm82 = vweird.f32 %v13
    %vm83 = vweird.f32 %v77
    %vm84 = vmor %vm82, %vm83
    %v85 = vsel %vm84, %v77, %v81
    %v86 = vand.u32 2147483647, %v13
    %vm87 = vcmp.eq.f32.partialorder %v86, 8.507059e+37
    %v88 = vand.u32 %v13, 2147483648
    %v89 = vor.u32 1.1754944e-38, %v88
    %v90 = vsel %vm87, %v89, %v85
    %v91 = vmul.f32 1.0, %v90
    %v92 = vrcp.pop %v14
    %v93 = vmul.f32 %v14, %v92
    %v94 = vsub.f32 1.0, %v93
    %v95 = vmul.f32 %v92, %v94
    %v96 = vadd.f32 %v92, %v95
    %vm97 = vweird.f32 %v14
    %vm98 = vweird.f32 %v92
    %vm99 = vmor %vm97, %vm98
    %v100 = vsel %vm99, %v92, %v96
    %v101 = vand.u32 2147483647, %v14
    %vm102 = vcmp.eq.f32.partialorder %v101, 8.507059e+37
    %v103 = vand.u32 %v14, 2147483648
    %v104 = vor.u32 1.1754944e-38, %v103
    %v105 = vsel %vm102, %v104, %v100
    %v106 = vmul.f32 1.0, %v105
    %v107 = vrcp.pop %v15
    %v108 = vmul.f32 %v15, %v107
    %v109 = vsub.f32 1.0, %v108
    %v110 = vmul.f32 %v107, %v109
    %v111 = vadd.f32 %v107, %v110
    %vm112 = vweird.f32 %v15
    %vm113 = vweird.f32 %v107
    %vm114 = vmor %vm112, %vm113
    %v115 = vsel %vm114, %v107, %v111
    %v116 = vand.u32 2147483647, %v15
    %vm117 = vcmp.eq.f32.partialorder %v116, 8.507059e+37
    %v118 = vand.u32 %v15, 2147483648
    %v119 = vor.u32 1.1754944e-38, %v118
    %v120 = vsel %vm117, %v119, %v115
    %v121 = vmul.f32 1.0, %v120
    %v122 = vrcp.pop %v16
    %v123 = vmul.f32 %v16, %v122
    %v124 = vsub.f32 1.0, %v123
    %v125 = vmul.f32 %v122, %v124
    %v126 = vadd.f32 %v122, %v125
    %vm127 = vweird.f32 %v16
    %vm128 = vweird.f32 %v122
    %vm129 = vmor %vm127, %vm128
    %v130 = vsel %vm129, %v122, %v126
    %v131 = vand.u32 2147483647, %v16
    %vm132 = vcmp.eq.f32.partialorder %v131, 8.507059e+37
    %v133 = vand.u32 %v16, 2147483648
    %v134 = vor.u32 1.1754944e-38, %v133
    %v135 = vsel %vm132, %v134, %v130
    %v136 = vmul.f32 1.0, %v135
    %vm137 = vcmask 64512
    %v138 = vsel %vm137, %v31, 0.0
    %v139 = vsel %vm137, %v46, 0.0
    %v140 = vadd.f32 %v138, %v139
    %v141 = vsel %vm137, %v61, 0.0
    %v142 = vadd.f32 %v140, %v141
    %v143 = vsel %vm137, %v76, 0.0
    %v144 = vadd.f32 %v142, %v143
    %v145 = vsel %vm137, %v91, 0.0
    %v146 = vadd.f32 %v144, %v145
    %v147 = vsel %vm137, %v106, 0.0
    %v148 = vadd.f32 %v146, %v147
    %v149 = vsel %vm137, %v121, 0.0
    %v150 = vadd.f32 %v148, %v149
    %v151 = vsel %vm137, %v136, 0.0
    %v152 = vadd.f32 %v150, %v151
    %v153 = vrot.slane %v152, 4
    %v154 = vadd.f32 %v152, %v153
    %v155 = vrot.slane %v154, 2
    %v156 = vadd.f32 %v154, %v155
    %v157 = vrot.slane %v156, 1
    %v158 = vadd.f32 %v156, %v157
    %v160 = vrot.slane %v136, 7
    %v162 = vadd.f32 %v31, %v160
    %v163 = vmul.f32 %v162, 0.5
    %v164 = vsub.f32 %v158, %v163
    %v165 = vrcp.pop %v164
    %v166 = vmul.f32 %v164, %v165
    %v167 = vsub.f32 1.0, %v166
    %v168 = vmul.f32 %v165, %v167
    %v169 = vadd.f32 %v165, %v168
    %vm170 = vweird.f32 %v164
    %vm171 = vweird.f32 %v165
    %vm172 = vmor %vm170, %vm171
    %v173 = vsel %vm172, %v165, %v169
    %v174 = vand.u32 2147483647, %v164
    %vm175 = vcmp.eq.f32.partialorder %v174, 8.507059e+37
    %v176 = vand.u32 %v164, 2147483648
    %v177 = vor.u32 1.1754944e-38, %v176
    %v178 = vsel %vm175, %v177, %v173
    %v179 = vmul.f32 63.0, %v178
    %vm180 = vcmask 57344
    %181 = vst.msk [vmem:[#allocation2] sm:$0x1] %vm180, %v179
    // Predicated region
    $region6: #{lf_layer_pallas.1} parent=1 // pred_check
      _
    $region7: #{lf_layer_pallas.1} parent=1 // pred_check_branch
      %183 = sbr.rel (0) target = $region9
    $region8: #{lf_layer_pallas.1} parent=1 // pred_region
      %185 = vsyncadd [#allocation3], 0
      %s187 = sshll.u32 [#allocation2], 4
      %s188 = int_to_ptr.vmem [resolvable:$true] %s187
      %s189 = sshll.u32 %s1, 4
      %s190 = int_to_ptr.hbm [resolvable:$true] %s189
      %192 = dma.vmem_to_hbm [thread:$0]  %s188, 16, %s190, [#allocation3]
    $region9: #{lf_layer_pallas.1} parent=1 // pred_fallthru
      _
    // Predicated region
    $region10: #{lf_layer_pallas.1} parent=1 // pred_check
      _
    $region11: #{lf_layer_pallas.1} parent=1 // pred_check_branch
      %194 = sbr.rel (0) target = $region13
    $region12: #{lf_layer_pallas.1} parent=1 // pred_region
      %196 = dma.done [#allocation3], 16
    $region13: #{lf_layer_pallas.1} parent=1 // pred_fallthru
      _
    %197 = vsyncpa [#allocation3], 1

</llo_original>
